<compile_context>
chip_gen: v7x
topology: tpu7x:2x2x1
jax: 0.10.0
libtpu: 0.0.40
codegen_flags: <defaults>
</compile_context>

<pallas_src>
import functools

import jax
import jax.numpy as jnp
from jax.experimental import pallas as pl
from jax.experimental.pallas import tpu as pltpu


def _critic_kernel(xa_ref, w2_ref, pk_ref, o_ref, *, in_dim):
    """One batch tile: xa [tb, S+A] -> q written as a lane-dense [1, tb] row.

    pk_ref rows: [0:SA] = w1, [SA] = b1, [SA+1] = b2, [SA+2] = w3 (as a row),
                 [SA+3, 0] = b3.
    """
    sa = in_dim
    xa = xa_ref[...]                        # [tb, SA]
    pk = pk_ref[...]                        # [SA+4, H]
    b1 = pk[sa:sa + 1, :]                   # [1, H]
    b2 = pk[sa + 1:sa + 2, :]               # [1, H]
    w3_row = pk[sa + 2:sa + 3, :]           # [1, H]
    b3 = pk[sa + 3:sa + 4, 0:1]             # [1, 1]

    # fc1 + relu, entirely on the VPU: unrolled outer products over the
    # SA (=4 for Pendulum) input columns.  ~(SA mults + SA adds) on 8 f32
    # vregs each at tb=128 -- disappears under the fc2 matmul.
    h1 = b1 + xa[:, 0:1] * pk[0:1, :]
    for k in range(1, sa):
        h1 = h1 + xa[:, k:k + 1] * pk[k:k + 1, :]
    h1 = jnp.maximum(h1, 0.0)               # [tb, H]

    # fc2 + relu on the MXU (the only matmul with a real contraction dim).
    h2 = jnp.dot(h1, w2_ref[...], preferred_element_type=jnp.float32)
    h2 = jnp.maximum(h2 + b2, 0.0)          # [tb, H]

    # fc3 as an NT matmul (same dimension-number pattern as q @ k.T in
    # attention): result is [1, tb], i.e. already lane-dense -- no
    # [tb,1]->[1,tb] relayout and no masked partial stores on writeback.
    q = jax.lax.dot_general(
        w3_row, h2, (((1,), (1,)), ((), ())),
        preferred_element_type=jnp.float32) + b3        # [1, tb]
    o_ref[...] = q.astype(o_ref.dtype)


def critic_forward(x, a, params, *, tile_b=128):
    """x: [B, state_dim], a: [B, action_dim] -> q: [B, 1].

    tile_b: batch rows per grid step.  128 keeps >=2 "parallel" steps at
    B=256 (feeds both v7x TensorCores); on v5e/v6e sweep 256-512.
    """
    w2, pk = params
    B = x.shape[0]
    sa = x.shape[1] + a.shape[1]
    H = w2.shape[1]

    # Single concat in the wrapper (trivially fusable / can be stored
    # pre-concatenated in a replay buffer) -> one activation DMA per step.
    xa = jnp.concatenate([x, a], axis=1)    # [B, S+A]

    tb = min(tile_b, B)
    if B % tb:
        tb = B  # whole-batch single block; avoids any jnp.pad HBM copy

    kernel = functools.partial(_critic_kernel, in_dim=sa)
    out = pl.pallas_call(
        kernel,
        out_shape=jax.ShapeDtypeStruct((1, B), jnp.float32),   # lane-dense q row
        grid=(B // tb,),
        in_specs=[
            pl.BlockSpec((tb, sa), lambda i: (i, 0)),       # xa: batch-tiled
            pl.BlockSpec((H, H), lambda i: (0, 0)),         # w2: VMEM-resident
            pl.BlockSpec((sa + 4, H), lambda i: (0, 0)),    # packed w1/b1/b2/w3/b3
        ],
        out_specs=pl.BlockSpec((1, tb), lambda i: (0, i)),  # lane-dense writeback
        compiler_params=pltpu.CompilerParams(
            dimension_semantics=("parallel",)),
    )(xa, w2, pk)
    return out.reshape(B, 1)                # metadata-only reshape of the row


def init_params(key, state_dim, action_dim, hidden_dim=64):
    """PyTorch nn.Linear-style init (U(+/-1/sqrt(fan_in))), packed for the kernel.

    Returns (w2, pk):
      w2  [hidden, hidden]                      (pre-transposed: y = x @ W)
      pk  [state_dim+action_dim+4, hidden] with rows
          (w1 rows, b1, b2, w3_as_row, b3 at [-1, 0]).
    """
    def uniform(k, shape, fan_in):
        bound = 1.0 / (fan_in ** 0.5)
        return jax.random.uniform(k, shape, jnp.float32, -bound, bound)

    ks = jax.random.split(key, 6)
    sa = state_dim + action_dim
    w1 = uniform(ks[0], (sa, hidden_dim), sa)
    b1 = uniform(ks[1], (hidden_dim,), sa)
    w2 = uniform(ks[2], (hidden_dim, hidden_dim), hidden_dim)
    b2 = uniform(ks[3], (hidden_dim,), hidden_dim)
    w3 = uniform(ks[4], (hidden_dim, 1), hidden_dim)
    b3 = uniform(ks[5], (1,), hidden_dim)

    pk = jnp.zeros((sa + 4, hidden_dim), jnp.float32)
    pk = pk.at[:sa].set(w1)
    pk = pk.at[sa].set(b1)
    pk = pk.at[sa + 1].set(b2)
    pk = pk.at[sa + 2].set(w3[:, 0])
    pk = pk.at[sa + 3, 0].set(b3[0])
    return (w2, pk)


def critic_ref(x, a, params):
    """Pure-JAX reference (mirrors the PyTorch forward exactly)."""
    w2, pk = params
    sa = x.shape[1] + a.shape[1]
    w1 = pk[:sa]
    b1, b2 = pk[sa], pk[sa + 1]
    w3 = pk[sa + 2][:, None]
    b3 = pk[sa + 3, 0]
    xa = jnp.concatenate([x, a], axis=1)
    h1 = jnp.maximum(xa @ w1 + b1, 0.0)
    h2 = jnp.maximum(h1 @ w2 + b2, 0.0)
    return h2 @ w3 + b3


if __name__ == "__main__":
    # Pendulum-v1: state_dim=3, action_dim=1.  B=256 exercises the batch grid
    # (two 128-row "parallel" tiles, one per v7x TensorCore) while staying
    # small and fast.
    batch, state_dim, action_dim, hidden_dim = 256, 3, 1, 64

    key = jax.random.PRNGKey(0)
    kx, ka, kp = jax.random.split(key, 3)
    x = jax.random.normal(kx, (batch, state_dim), jnp.float32)
    a = jax.random.uniform(ka, (batch, action_dim), jnp.float32, -2.0, 2.0)
    params = init_params(kp, state_dim, action_dim, hidden_dim)

    q = jax.block_until_ready(critic_forward(x, a, params))
    q_ref = critic_ref(x, a, params)

    assert q.shape == (batch, 1), q.shape
    assert jnp.allclose(q, q_ref, atol=1e-4, rtol=1e-4), float(
        jnp.max(jnp.abs(q - q_ref)))
    print("KERNEL_OK")
</pallas_src>

<mosaic_0001>
module attributes {stable_mosaic.version = 11 : i64} {
  func.func @_critic_kernel(%arg0: i32, %arg1: memref<128x4xf32, #tpu.memory_space<vmem>>, %arg2: memref<64x64xf32, #tpu.memory_space<vmem>>, %arg3: memref<8x64xf32, #tpu.memory_space<vmem>>, %arg4: memref<1x128xf32, #tpu.memory_space<vmem>>) attributes {dimension_semantics = [#tpu.dimension_semantics<parallel>], iteration_bounds = array<i64: 2>, scalar_prefetch = 0 : i64, scratch_operands = 0 : i64, tpu.core_type = #tpu.core_type<tc>, window_params = [{transform_indices = @transform_0, window_bounds = array<i64: 128, 4>}, {pipeline_mode = #tpu.pipeline_mode<synchronous>, transform_indices = @transform_1, window_bounds = array<i64: 64, 64>}, {pipeline_mode = #tpu.pipeline_mode<synchronous>, transform_indices = @transform_2, window_bounds = array<i64: 8, 64>}, {transform_indices = @transform_3, window_bounds = array<i64: 1, 128>}]} {
    %c0 = arith.constant 0 : index
    %c0_0 = arith.constant 0 : index
    %0 = vector.load %arg1[%c0, %c0_0] : memref<128x4xf32, #tpu.memory_space<vmem>>, vector<128x4xf32>
    %c0_1 = arith.constant 0 : index
    %c0_2 = arith.constant 0 : index
    %1 = vector.load %arg3[%c0_1, %c0_2] : memref<8x64xf32, #tpu.memory_space<vmem>>, vector<8x64xf32>
    %2 = vector.extract_strided_slice %1 {offsets = [4, 0], sizes = [1, 64], strides = [1, 1]} : vector<8x64xf32> to vector<1x64xf32>
    %3 = vector.extract_strided_slice %1 {offsets = [5, 0], sizes = [1, 64], strides = [1, 1]} : vector<8x64xf32> to vector<1x64xf32>
    %4 = vector.extract_strided_slice %1 {offsets = [6, 0], sizes = [1, 64], strides = [1, 1]} : vector<8x64xf32> to vector<1x64xf32>
    %5 = vector.extract_strided_slice %1 {offsets = [7, 0], sizes = [1, 1], strides = [1, 1]} : vector<8x64xf32> to vector<1x1xf32>
    %6 = vector.extract_strided_slice %0 {offsets = [0, 0], sizes = [128, 1], strides = [1, 1]} : vector<128x4xf32> to vector<128x1xf32>
    %7 = vector.extract_strided_slice %1 {offsets = [0, 0], sizes = [1, 64], strides = [1, 1]} : vector<8x64xf32> to vector<1x64xf32>
    %8 = vector.broadcast %6 : vector<128x1xf32> to vector<128x64xf32>
    %9 = vector.broadcast %7 : vector<1x64xf32> to vector<128x64xf32>
    %10 = arith.mulf %8, %9 : vector<128x64xf32>
    %11 = vector.broadcast %2 : vector<1x64xf32> to vector<128x64xf32>
    %12 = arith.addf %11, %10 : vector<128x64xf32>
    %13 = vector.extract_strided_slice %0 {offsets = [0, 1], sizes = [128, 1], strides = [1, 1]} : vector<128x4xf32> to vector<128x1xf32>
    %14 = vector.extract_strided_slice %1 {offsets = [1, 0], sizes = [1, 64], strides = [1, 1]} : vector<8x64xf32> to vector<1x64xf32>
    %15 = vector.broadcast %13 : vector<128x1xf32> to vector<128x64xf32>
    %16 = vector.broadcast %14 : vector<1x64xf32> to vector<128x64xf32>
    %17 = arith.mulf %15, %16 : vector<128x64xf32>
    %18 = arith.addf %12, %17 : vector<128x64xf32>
    %19 = vector.extract_strided_slice %0 {offsets = [0, 2], sizes = [128, 1], strides = [1, 1]} : vector<128x4xf32> to vector<128x1xf32>
    %20 = vector.extract_strided_slice %1 {offsets = [2, 0], sizes = [1, 64], strides = [1, 1]} : vector<8x64xf32> to vector<1x64xf32>
    %21 = vector.broadcast %19 : vector<128x1xf32> to vector<128x64xf32>
    %22 = vector.broadcast %20 : vector<1x64xf32> to vector<128x64xf32>
    %23 = arith.mulf %21, %22 : vector<128x64xf32>
    %24 = arith.addf %18, %23 : vector<128x64xf32>
    %25 = vector.extract_strided_slice %0 {offsets = [0, 3], sizes = [128, 1], strides = [1, 1]} : vector<128x4xf32> to vector<128x1xf32>
    %26 = vector.extract_strided_slice %1 {offsets = [3, 0], sizes = [1, 64], strides = [1, 1]} : vector<8x64xf32> to vector<1x64xf32>
    %27 = vector.broadcast %25 : vector<128x1xf32> to vector<128x64xf32>
    %28 = vector.broadcast %26 : vector<1x64xf32> to vector<128x64xf32>
    %29 = arith.mulf %27, %28 : vector<128x64xf32>
    %30 = arith.addf %24, %29 : vector<128x64xf32>
    %cst = arith.constant 0.000000e+00 : f32
    %31 = vector.broadcast %cst : f32 to vector<128x64xf32>
    %32 = arith.maximumf %30, %31 : vector<128x64xf32>
    %c0_3 = arith.constant 0 : index
    %c0_4 = arith.constant 0 : index
    %33 = vector.load %arg2[%c0_3, %c0_4] : memref<64x64xf32, #tpu.memory_space<vmem>>, vector<64x64xf32>
    %cst_5 = arith.constant dense<0.000000e+00> : vector<128x64xf32>
    %34 = tpu.matmul %32, %33, %cst_5 {dimension_numbers = #tpu.dot_dimension_numbers<[1], [0], [0], [1], [0, 0, 1, 1], [], []>} : vector<128x64xf32>, vector<64x64xf32>, vector<128x64xf32> -> vector<128x64xf32>
    %35 = vector.broadcast %3 : vector<1x64xf32> to vector<128x64xf32>
    %36 = arith.addf %34, %35 : vector<128x64xf32>
    %cst_6 = arith.constant 0.000000e+00 : f32
    %37 = vector.broadcast %cst_6 : f32 to vector<128x64xf32>
    %38 = arith.maximumf %36, %37 : vector<128x64xf32>
    %cst_7 = arith.constant dense<0.000000e+00> : vector<1x128xf32>
    %39 = tpu.matmul %4, %38, %cst_7 {dimension_numbers = #tpu.dot_dimension_numbers<[1], [1], [0], [0], [0, 0, 1, 0], [], []>} : vector<1x64xf32>, vector<128x64xf32>, vector<1x128xf32> -> vector<1x128xf32>
    %40 = vector.broadcast %5 : vector<1x1xf32> to vector<1x128xf32>
    %41 = arith.addf %39, %40 : vector<1x128xf32>
    %c0_8 = arith.constant 0 : index
    %c0_9 = arith.constant 0 : index
    %42 = vector.load %arg4[%c0_8, %c0_9] : memref<1x128xf32, #tpu.memory_space<vmem>>, vector<1x128xf32>
    tpu.vector_store %arg4[%c0_8, %c0_9], %41 {strides = array<i32>} : memref<1x128xf32, #tpu.memory_space<vmem>>, vector<1x128xf32>,
    return
  }
  func.func @transform_0(%arg0: i32) -> (i32, i32) {
    %c0_i32 = arith.constant 0 : i32
    %c0_i32_0 = arith.constant 0 : i32
    return %arg0, %c0_i32 : i32, i32
  }
  func.func @transform_1(%arg0: i32) -> (i32, i32) {
    %c0_i32 = arith.constant 0 : i32
    %c0_i32_0 = arith.constant 0 : i32
    %c0_i32_1 = arith.constant 0 : i32
    return %c0_i32, %c0_i32_0 : i32, i32
  }
  func.func @transform_2(%arg0: i32) -> (i32, i32) {
    %c0_i32 = arith.constant 0 : i32
    %c0_i32_0 = arith.constant 0 : i32
    %c0_i32_1 = arith.constant 0 : i32
    return %c0_i32, %c0_i32_0 : i32, i32
  }
  func.func @transform_3(%arg0: i32) -> (i32, i32) {
    %c0_i32 = arith.constant 0 : i32
    %c0_i32_0 = arith.constant 0 : i32
    return %c0_i32, %arg0 : i32, i32
  }
}

</mosaic_0001>

<llo_original>
// kernel: tpu_custom_call.1
$region0: #{tpu_custom_call.1}
  #allocation0 [shape = 'u32[]', space=smem, size = 0x4, offset = 0x4, fixed_abs, tag = 'smem constant byte address 0x4 - core index']
  #allocation1 [shape = 'u32[144,128]{1,0:T(1,128)}', space=vmem, size = 0x12000, scoped, tag = 'internal scratch']
  %s0 = inlined_call_operand.vmem [shape: f32[256,4], index: 0, kind: input, shape index: {}]
  %s1 = inlined_call_operand.vmem [shape: f32[64,64], index: 1, kind: input, shape index: {}]
  %s2 = inlined_call_operand.vmem [shape: f32[8,64], index: 2, kind: input, shape index: {}]
  %s3 = inlined_call_operand.hbm [shape: f32[1,256], index: 3, kind: output, shape index: {}]
  %s4 = sld [smem:[#allocation0]]
  $region45: #{tpu_custom_call.1} parent=0
    _
  %s6 = ssub.s32 1, %s4
  %s7 = scalar_select 0, %s6, %s4
  $region1: #{tpu_custom_call.1} parent=0
    #allocation2 [shape = 'u8[1024]{0}', space=vmem, size = 0x400, scoped, tag = 'output window, operand 0']
    #allocation3 [shape = 's32[2]{0}', space=sflag, size = 0x8, scoped, tag = 'scoped memory for tpu_custom_call.1']
    %8 = vsyncpa [#allocation3], 0
    %s9 = scalar_lea.sflag [#allocation3], 1
    %10 = vsyncpa %s9, 0
    loop: start=0, step=1, limit=4
    $region2: #{tpu_custom_call.1} parent=1 // loop_pre_header
      _
    $region3: #{tpu_custom_call.1} parent=1 // loop_header
      %s12 = sphi 0, %s16
      %p13 = scmp.ge.s32.totalorder %s12, 4
      %s22 = sphi 0, %s24
      %s25 = sphi 0, %s22
      %s26 = sphi 0, %s25
      %s42 = sphi 0, %s26
      %s46 = sphi 0, %s46
      %s48 = sphi 0, %s46
      %s49 = sphi 0, %s48
      %s63 = sphi 0, %s49
      %s67 = sphi 0, %s67
      %s69 = sphi 0, %s67
      %s70 = sphi 0, %s69
      %s84 = sphi 0, %s70
      %s90 = sphi 0, %s92
      %s93 = sphi 0, %s90
      %s94 = sphi 0, %s93
      %s110 = sphi 0, %s94
    $region4: #{tpu_custom_call.1} parent=1 // loop_header_branch
      %15 = sbr.rel (%p13) target = $region8
    $region5: #{tpu_custom_call.1} parent=1 // loop_body
      %s17 = ssub.s32 %s12, 1
      %s18 = ssub.s32 %s12, 2
      %s19 = sadd.s32 %s12, 1
      %s20 = ssub.s32 %s12, %s19
      %p21 = scmp.eq.s32.totalorder %s20, 0
      %s23 = sadd.s32 %s22, 1
      %s24 = scalar_select %p21, %s22, %s23
      %p27 = pneg %p21
      %p28 = scmp.eq.s32.totalorder %s12, 1
      %p29 = por %p27, %p28
      %p30 = scmp.ne.s32.totalorder %s22, %s25
      %p31 = scmp.eq.s32.totalorder %s12, 0
      %p32 = por %p30, %p31
      %p33 = scmp.ne.s32.totalorder %s22, %s25
      %p34 = scmp.eq.s32.totalorder %s17, 1
      %p35 = por %p33, %p34
      %p36 = scmp.ne.s32.totalorder %s25, %s26
      %p37 = scmp.eq.s32.totalorder %s17, 0
      %p38 = por %p36, %p37
      %p39 = scmp.ne.s32.totalorder %s25, %s26
      %p40 = scmp.eq.s32.totalorder %s18, 1
      %p41 = por %p39, %p40
      %p43 = scmp.ne.s32.totalorder %s26, %s42
      %p44 = scmp.eq.s32.totalorder %s18, 0
      %p45 = por %p43, %p44
      %s47 = sadd.s32 %s46, 1
      %p50 = scmp.eq.s32.totalorder %s12, 1
      %p51 = scmp.ne.s32.totalorder %s46, %s48
      %p52 = scmp.eq.s32.totalorder %s12, 0
      %p53 = por %p51, %p52
      %p54 = scmp.ne.s32.totalorder %s46, %s48
      %p55 = scmp.eq.s32.totalorder %s17, 1
      %p56 = por %p54, %p55
      %p57 = scmp.ne.s32.totalorder %s48, %s49
      %p58 = scmp.eq.s32.totalorder %s17, 0
      %p59 = por %p57, %p58
      %p60 = scmp.ne.s32.totalorder %s48, %s49
      %p61 = scmp.eq.s32.totalorder %s18, 1
      %p62 = por %p60, %p61
      %p64 = scmp.ne.s32.totalorder %s49, %s63
      %p65 = scmp.eq.s32.totalorder %s18, 0
      %p66 = por %p64, %p65
      %s68 = sadd.s32 %s67, 1
      %p71 = scmp.eq.s32.totalorder %s12, 1
      %p72 = scmp.ne.s32.totalorder %s67, %s69
      %p73 = scmp.eq.s32.totalorder %s12, 0
      %p74 = por %p72, %p73
      %p75 = scmp.ne.s32.totalorder %s67, %s69
      %p76 = scmp.eq.s32.totalorder %s17, 1
      %p77 = por %p75, %p76
      %p78 = scmp.ne.s32.totalorder %s69, %s70
      %p79 = scmp.eq.s32.totalorder %s17, 0
      %p80 = por %p78, %p79
      %p81 = scmp.ne.s32.totalorder %s69, %s70
      %p82 = scmp.eq.s32.totalorder %s18, 1
      %p83 = por %p81, %p82
      %p85 = scmp.ne.s32.totalorder %s70, %s84
      %p86 = scmp.eq.s32.totalorder %s18, 0
      %p87 = por %p85, %p86
      %s88 = ssub.s32 %s12, %s19
      %p89 = scmp.eq.s32.totalorder %s88, 0
      %s91 = sadd.s32 %s90, 1
      %s92 = scalar_select %p89, %s90, %s91
      %p95 = pneg %p89
      %p96 = scmp.eq.s32.totalorder %s12, 1
      %p97 = por %p95, %p96
      %p98 = scmp.ne.s32.totalorder %s90, %s93
      %p99 = scmp.eq.s32.totalorder %s12, 0
      %p100 = por %p98, %p99
      %p101 = scmp.ne.s32.totalorder %s90, %s93
      %p102 = scmp.eq.s32.totalorder %s17, 1
      %p103 = por %p101, %p102
      %p104 = scmp.ne.s32.totalorder %s93, %s94
      %p105 = scmp.eq.s32.totalorder %s17, 0
      %p106 = por %p104, %p105
      %p107 = scmp.ne.s32.totalorder %s93, %s94
      %p108 = scmp.eq.s32.totalorder %s18, 1
      %p109 = por %p107, %p108
      %p111 = scmp.ne.s32.totalorder %s94, %s110
      %p112 = scmp.eq.s32.totalorder %s18, 0
      %p113 = por %p111, %p112
      %p114 = scmp.le.s32.totalorder 1, %s12
      %p115 = scmp.lt.s32.totalorder %s12, 3
      %p116 = pnand %p114, %p115
      %p117 = pneg %p116
      // Predicated region
      $region9: #{tpu_custom_call.1} parent=5 // pred_check
        _
      $region10: #{tpu_custom_call.1} parent=5 // pred_check_branch
        %119 = sbr.rel (%p116) target = $region12
      $region11: #{tpu_custom_call.1} parent=5 // pred_region
        %s120 = ssub.s32 %s12, 1
        // Predicated region
        $region13: #{tpu_custom_call.1} parent=11 // pred_check
          %p121 = pneg %p59
        $region14: #{tpu_custom_call.1} parent=11 // pred_check_branch
          %123 = sbr.rel (%p121) target = $region16
        $region15: #{tpu_custom_call.1} parent=11 // pred_region
          _
        $region16: #{tpu_custom_call.1} parent=11 // pred_fallthru
          _
        // Predicated region
        $region17: #{tpu_custom_call.1} parent=11 // pred_check
          %p124 = pneg %p80
        $region18: #{tpu_custom_call.1} parent=11 // pred_check_branch
          %126 = sbr.rel (%p124) target = $region20
        $region19: #{tpu_custom_call.1} parent=11 // pred_region
          _
        $region20: #{tpu_custom_call.1} parent=11 // pred_fallthru
          _
      $region12: #{tpu_custom_call.1} parent=5 // pred_fallthru
        _
      %p127 = scmp.lt.s32.totalorder %s12, 2
      // Predicated region
      $region21: #{tpu_custom_call.1} parent=5 // pred_check
        %p128 = pneg %p127
      $region22: #{tpu_custom_call.1} parent=5 // pred_check_branch
        %130 = sbr.rel (%p128) target = $region24
      $region23: #{tpu_custom_call.1} parent=5 // pred_region
        // Predicated region
        $region25: #{tpu_custom_call.1} parent=23 // pred_check
          %p131 = pneg %p32
        $region26: #{tpu_custom_call.1} parent=23 // pred_check_branch
          %133 = sbr.rel (%p131) target = $region28
        $region27: #{tpu_custom_call.1} parent=23 // pred_region
          %s134 = smul.u32 16, %s12
          %p135 = scmp.lt.s32.totalorder %s134, 31
          %s136 = scalar_select %p135, %s134, 31
          %s137 = smul.addr %s136, 8
          %s138 = scalar_lea.vmem %s0, %s137
          %s139 = smul.u32 16, %s12
        $region28: #{tpu_custom_call.1} parent=23 // pred_fallthru
          _
      $region24: #{tpu_custom_call.1} parent=5 // pred_fallthru
        _
      %p140 = scmp.le.s32.totalorder 1, %s12
      %p141 = scmp.lt.s32.totalorder %s12, 3
      %p142 = pnand %p140, %p141
      %p143 = pneg %p142
      // Predicated region
      $region29: #{tpu_custom_call.1} parent=5 // pred_check
        _
      $region30: #{tpu_custom_call.1} parent=5 // pred_check_branch
        %145 = sbr.rel (%p142) target = $region32
      $region31: #{tpu_custom_call.1} parent=5 // pred_region
        %s146 = ssub.s32 %s12, 1
        %s147 = smul.u32 16, %s17
        %p148 = scmp.lt.s32.totalorder %s147, 31
        %s149 = scalar_select %p148, %s147, 31
        %s150 = smul.addr %s149, 8
        %s151 = scalar_lea.vmem %s0, %s150
        %p152 = pneg %p38
        %p153 = pneg %p35
        %p154 = pneg %p59
        %p155 = pneg %p56
        %p156 = pneg %p80
        %p157 = pneg %p77
        %p158 = pneg %p106
        %p159 = pneg %p103
        %s160 = sand.u32 %s93, 1
        %s161 = scalar_lea.sflag [#allocation3], %s160
        %s162 = sand.u32 %s93, 1
        %s163 = scalar_lea.vmem [#allocation2], %s162
        %s164 = smul.u32 16, %s17
        %p165 = scmp.lt.s32.totalorder %s164, 31
        %s166 = scalar_select %p165, %s164, 31
        %s167 = smul.addr %s166, 8
        %s168 = scalar_lea.vmem %s0, %s167
        %s169 = smul.u32 16, %s17
        %v170 = vld [vmem:[%s168] sm:$0xff]
        %v171 = vld [vmem:[%s168 + $0x8] sm:$0xff]
        %v172 = vld [vmem:[%s168 + $0x10] sm:$0xff]
        %v173 = vld [vmem:[%s168 + $0x18] sm:$0xff]
        %v174 = vld [vmem:[%s168 + $0x20] sm:$0xff]
        %v175 = vld [vmem:[%s168 + $0x28] sm:$0xff]
        %v176 = vld [vmem:[%s168 + $0x30] sm:$0xff]
        %v177 = vld [vmem:[%s168 + $0x38] sm:$0xff]
        %v178 = vld [vmem:[%s168 + $0x40] sm:$0xff]
        %v179 = vld [vmem:[%s168 + $0x48] sm:$0xff]
        %v180 = vld [vmem:[%s168 + $0x50] sm:$0xff]
        %v181 = vld [vmem:[%s168 + $0x58] sm:$0xff]
        %v182 = vld [vmem:[%s168 + $0x60] sm:$0xff]
        %v183 = vld [vmem:[%s168 + $0x68] sm:$0xff]
        %v184 = vld [vmem:[%s168 + $0x70] sm:$0xff]
        %v185 = vld [vmem:[%s168 + $0x78] sm:$0xff]
        %v186 = vld [vmem:[%s2] sm:$0xff]
        %188 = vset.pattern.permute.xlu0 0
        %189 = vperm.xlu0 %188, %v170
        %v190 = vpop.permute.xlu0 %189
        %193 = vset.pattern.permute.xlu0 0
        %194 = vperm.xlu0 %193, %v171
        %v195 = vpop.permute.xlu0 %194
        %198 = vset.pattern.permute.xlu0 0
        %199 = vperm.xlu0 %198, %v172
        %v200 = vpop.permute.xlu0 %199
        %203 = vset.pattern.permute.xlu0 0
        %204 = vperm.xlu0 %203, %v173
        %v205 = vpop.permute.xlu0 %204
        %208 = vset.pattern.permute.xlu0 0
        %209 = vperm.xlu0 %208, %v174
        %v210 = vpop.permute.xlu0 %209
        %213 = vset.pattern.permute.xlu0 0
        %214 = vperm.xlu0 %213, %v175
        %v215 = vpop.permute.xlu0 %214
        %218 = vset.pattern.permute.xlu0 0
        %219 = vperm.xlu0 %218, %v176
        %v220 = vpop.permute.xlu0 %219
        %223 = vset.pattern.permute.xlu0 0
        %224 = vperm.xlu0 %223, %v177
        %v225 = vpop.permute.xlu0 %224
        %228 = vset.pattern.permute.xlu0 0
        %229 = vperm.xlu0 %228, %v178
        %v230 = vpop.permute.xlu0 %229
        %233 = vset.pattern.permute.xlu0 0
        %234 = vperm.xlu0 %233, %v179
        %v235 = vpop.permute.xlu0 %234
        %238 = vset.pattern.permute.xlu0 0
        %239 = vperm.xlu0 %238, %v180
        %v240 = vpop.permute.xlu0 %239
        %243 = vset.pattern.permute.xlu0 0
        %244 = vperm.xlu0 %243, %v181
        %v245 = vpop.permute.xlu0 %244
        %248 = vset.pattern.permute.xlu0 0
        %249 = vperm.xlu0 %248, %v182
        %v250 = vpop.permute.xlu0 %249
        %253 = vset.pattern.permute.xlu0 0
        %254 = vperm.xlu0 %253, %v183
        %v255 = vpop.permute.xlu0 %254
        %258 = vset.pattern.permute.xlu0 0
        %259 = vperm.xlu0 %258, %v184
        %v260 = vpop.permute.xlu0 %259
        %263 = vset.pattern.permute.xlu0 0
        %264 = vperm.xlu0 %263, %v185
        %v265 = vpop.permute.xlu0 %264
        %v267 = vlaneseq
        %v268 = vshrl.u32 %v267, 7
        %v269 = vsub.s32 0, %v268
        %v270 = vrot.slane %v186, %v269
        %v271 = vmul.f32 %v190, %v270
        %v272 = vmul.f32 %v195, %v270
        %v273 = vmul.f32 %v200, %v270
        %v274 = vmul.f32 %v205, %v270
        %v275 = vmul.f32 %v210, %v270
        %v276 = vmul.f32 %v215, %v270
        %v277 = vmul.f32 %v220, %v270
        %v278 = vmul.f32 %v225, %v270
        %v279 = vmul.f32 %v230, %v270
        %v280 = vmul.f32 %v235, %v270
        %v281 = vmul.f32 %v240, %v270
        %v282 = vmul.f32 %v245, %v270
        %v283 = vmul.f32 %v250, %v270
        %v284 = vmul.f32 %v255, %v270
        %v285 = vmul.f32 %v260, %v270
        %v286 = vmul.f32 %v265, %v270
        %v287 = vlaneseq
        %v288 = vshrl.u32 %v287, 7
        %v289 = vsub.s32 4, %v288
        %v290 = vrot.slane %v186, %v289
        %v291 = vadd.f32 %v290, %v271
        %v292 = vadd.f32 %v290, %v272
        %v293 = vadd.f32 %v290, %v273
        %v294 = vadd.f32 %v290, %v274
        %v295 = vadd.f32 %v290, %v275
        %v296 = vadd.f32 %v290, %v276
        %v297 = vadd.f32 %v290, %v277
        %v298 = vadd.f32 %v290, %v278
        %v299 = vadd.f32 %v290, %v279
        %v300 = vadd.f32 %v290, %v280
        %v301 = vadd.f32 %v290, %v281
        %v302 = vadd.f32 %v290, %v282
        %v303 = vadd.f32 %v290, %v283
        %v304 = vadd.f32 %v290, %v284
        %v305 = vadd.f32 %v290, %v285
        %v306 = vadd.f32 %v290, %v286
        %307 = vset.pattern.permute.xlu0 1
        %308 = vperm.xlu0 %307, %v170
        %v309 = vpop.permute.xlu0 %308
        %311 = vset.pattern.permute.xlu0 1
        %312 = vperm.xlu0 %311, %v171
        %v313 = vpop.permute.xlu0 %312
        %315 = vset.pattern.permute.xlu0 1
        %316 = vperm.xlu0 %315, %v172
        %v317 = vpop.permute.xlu0 %316
        %319 = vset.pattern.permute.xlu0 1
        %320 = vperm.xlu0 %319, %v173
        %v321 = vpop.permute.xlu0 %320
        %323 = vset.pattern.permute.xlu0 1
        %324 = vperm.xlu0 %323, %v174
        %v325 = vpop.permute.xlu0 %324
        %327 = vset.pattern.permute.xlu0 1
        %328 = vperm.xlu0 %327, %v175
        %v329 = vpop.permute.xlu0 %328
        %331 = vset.pattern.permute.xlu0 1
        %332 = vperm.xlu0 %331, %v176
        %v333 = vpop.permute.xlu0 %332
        %335 = vset.pattern.permute.xlu0 1
        %336 = vperm.xlu0 %335, %v177
        %v337 = vpop.permute.xlu0 %336
        %339 = vset.pattern.permute.xlu0 1
        %340 = vperm.xlu0 %339, %v178
        %v341 = vpop.permute.xlu0 %340
        %343 = vset.pattern.permute.xlu0 1
        %344 = vperm.xlu0 %343, %v179
        %v345 = vpop.permute.xlu0 %344
        %347 = vset.pattern.permute.xlu0 1
        %348 = vperm.xlu0 %347, %v180
        %v349 = vpop.permute.xlu0 %348
        %351 = vset.pattern.permute.xlu0 1
        %352 = vperm.xlu0 %351, %v181
        %v353 = vpop.permute.xlu0 %352
        %355 = vset.pattern.permute.xlu0 1
        %356 = vperm.xlu0 %355, %v182
        %v357 = vpop.permute.xlu0 %356
        %359 = vset.pattern.permute.xlu0 1
        %360 = vperm.xlu0 %359, %v183
        %v361 = vpop.permute.xlu0 %360
        %363 = vset.pattern.permute.xlu0 1
        %364 = vperm.xlu0 %363, %v184
        %v365 = vpop.permute.xlu0 %364
        %367 = vset.pattern.permute.xlu0 1
        %368 = vperm.xlu0 %367, %v185
        %v369 = vpop.permute.xlu0 %368
        %v371 = vlaneseq
        %v372 = vshrl.u32 %v371, 7
        %v373 = vsub.s32 1, %v372
        %v374 = vrot.slane %v186, %v373
        %v375 = vmul.f32 %v309, %v374
        %v376 = vmul.f32 %v313, %v374
        %v377 = vmul.f32 %v317, %v374
        %v378 = vmul.f32 %v321, %v374
        %v379 = vmul.f32 %v325, %v374
        %v380 = vmul.f32 %v329, %v374
        %v381 = vmul.f32 %v333, %v374
        %v382 = vmul.f32 %v337, %v374
        %v383 = vmul.f32 %v341, %v374
        %v384 = vmul.f32 %v345, %v374
        %v385 = vmul.f32 %v349, %v374
        %v386 = vmul.f32 %v353, %v374
        %v387 = vmul.f32 %v357, %v374
        %v388 = vmul.f32 %v361, %v374
        %v389 = vmul.f32 %v365, %v374
        %v390 = vmul.f32 %v369, %v374
        %v391 = vadd.f32 %v291, %v375
        %v392 = vadd.f32 %v292, %v376
        %v393 = vadd.f32 %v293, %v377
        %v394 = vadd.f32 %v294, %v378
        %v395 = vadd.f32 %v295, %v379
        %v396 = vadd.f32 %v296, %v380
        %v397 = vadd.f32 %v297, %v381
        %v398 = vadd.f32 %v298, %v382
        %v399 = vadd.f32 %v299, %v383
        %v400 = vadd.f32 %v300, %v384
        %v401 = vadd.f32 %v301, %v385
        %v402 = vadd.f32 %v302, %v386
        %v403 = vadd.f32 %v303, %v387
        %v404 = vadd.f32 %v304, %v388
        %v405 = vadd.f32 %v305, %v389
        %v406 = vadd.f32 %v306, %v390
        %407 = vset.pattern.permute.xlu0 2
        %408 = vperm.xlu0 %407, %v170
        %v409 = vpop.permute.xlu0 %408
        %411 = vset.pattern.permute.xlu0 2
        %412 = vperm.xlu0 %411, %v171
        %v413 = vpop.permute.xlu0 %412
        %415 = vset.pattern.permute.xlu0 2
        %416 = vperm.xlu0 %415, %v172
        %v417 = vpop.permute.xlu0 %416
        %419 = vset.pattern.permute.xlu0 2
        %420 = vperm.xlu0 %419, %v173
        %v421 = vpop.permute.xlu0 %420
        %423 = vset.pattern.permute.xlu0 2
        %424 = vperm.xlu0 %423, %v174
        %v425 = vpop.permute.xlu0 %424
        %427 = vset.pattern.permute.xlu0 2
        %428 = vperm.xlu0 %427, %v175
        %v429 = vpop.permute.xlu0 %428
        %431 = vset.pattern.permute.xlu0 2
        %432 = vperm.xlu0 %431, %v176
        %v433 = vpop.permute.xlu0 %432
        %435 = vset.pattern.permute.xlu0 2
        %436 = vperm.xlu0 %435, %v177
        %v437 = vpop.permute.xlu0 %436
        %439 = vset.pattern.permute.xlu0 2
        %440 = vperm.xlu0 %439, %v178
        %v441 = vpop.permute.xlu0 %440
        %443 = vset.pattern.permute.xlu0 2
        %444 = vperm.xlu0 %443, %v179
        %v445 = vpop.permute.xlu0 %444
        %447 = vset.pattern.permute.xlu0 2
        %448 = vperm.xlu0 %447, %v180
        %v449 = vpop.permute.xlu0 %448
        %451 = vset.pattern.permute.xlu0 2
        %452 = vperm.xlu0 %451, %v181
        %v453 = vpop.permute.xlu0 %452
        %455 = vset.pattern.permute.xlu0 2
        %456 = vperm.xlu0 %455, %v182
        %v457 = vpop.permute.xlu0 %456
        %459 = vset.pattern.permute.xlu0 2
        %460 = vperm.xlu0 %459, %v183
        %v461 = vpop.permute.xlu0 %460
        %463 = vset.pattern.permute.xlu0 2
        %464 = vperm.xlu0 %463, %v184
        %v465 = vpop.permute.xlu0 %464
        %467 = vset.pattern.permute.xlu0 2
        %468 = vperm.xlu0 %467, %v185
        %v469 = vpop.permute.xlu0 %468
        %v471 = vlaneseq
        %v472 = vshrl.u32 %v471, 7
        %v473 = vsub.s32 2, %v472
        %v474 = vrot.slane %v186, %v473
        %v475 = vmul.f32 %v409, %v474
        %v476 = vmul.f32 %v413, %v474
        %v477 = vmul.f32 %v417, %v474
        %v478 = vmul.f32 %v421, %v474
        %v479 = vmul.f32 %v425, %v474
        %v480 = vmul.f32 %v429, %v474
        %v481 = vmul.f32 %v433, %v474
        %v482 = vmul.f32 %v437, %v474
        %v483 = vmul.f32 %v441, %v474
        %v484 = vmul.f32 %v445, %v474
        %v485 = vmul.f32 %v449, %v474
        %v486 = vmul.f32 %v453, %v474
        %v487 = vmul.f32 %v457, %v474
        %v488 = vmul.f32 %v461, %v474
        %v489 = vmul.f32 %v465, %v474
        %v490 = vmul.f32 %v469, %v474
        %v491 = vadd.f32 %v391, %v475
        %v492 = vadd.f32 %v392, %v476
        %v493 = vadd.f32 %v393, %v477
        %v494 = vadd.f32 %v394, %v478
        %v495 = vadd.f32 %v395, %v479
        %v496 = vadd.f32 %v396, %v480
        %v497 = vadd.f32 %v397, %v481
        %v498 = vadd.f32 %v398, %v482
        %v499 = vadd.f32 %v399, %v483
        %v500 = vadd.f32 %v400, %v484
        %v501 = vadd.f32 %v401, %v485
        %v502 = vadd.f32 %v402, %v486
        %v503 = vadd.f32 %v403, %v487
        %v504 = vadd.f32 %v404, %v488
        %v505 = vadd.f32 %v405, %v489
        %v506 = vadd.f32 %v406, %v490
        %507 = vset.pattern.permute.xlu0 3
        %508 = vperm.xlu0 %507, %v170
        %v509 = vpop.permute.xlu0 %508
        %511 = vset.pattern.permute.xlu0 3
        %512 = vperm.xlu0 %511, %v171
        %v513 = vpop.permute.xlu0 %512
        %515 = vset.pattern.permute.xlu0 3
        %516 = vperm.xlu0 %515, %v172
        %v517 = vpop.permute.xlu0 %516
        %519 = vset.pattern.permute.xlu0 3
        %520 = vperm.xlu0 %519, %v173
        %v521 = vpop.permute.xlu0 %520
        %523 = vset.pattern.permute.xlu0 3
        %524 = vperm.xlu0 %523, %v174
        %v525 = vpop.permute.xlu0 %524
        %527 = vset.pattern.permute.xlu0 3
        %528 = vperm.xlu0 %527, %v175
        %v529 = vpop.permute.xlu0 %528
        %531 = vset.pattern.permute.xlu0 3
        %532 = vperm.xlu0 %531, %v176
        %v533 = vpop.permute.xlu0 %532
        %535 = vset.pattern.permute.xlu0 3
        %536 = vperm.xlu0 %535, %v177
        %v537 = vpop.permute.xlu0 %536
        %539 = vset.pattern.permute.xlu0 3
        %540 = vperm.xlu0 %539, %v178
        %v541 = vpop.permute.xlu0 %540
        %543 = vset.pattern.permute.xlu0 3
        %544 = vperm.xlu0 %543, %v179
        %v545 = vpop.permute.xlu0 %544
        %547 = vset.pattern.permute.xlu0 3
        %548 = vperm.xlu0 %547, %v180
        %v549 = vpop.permute.xlu0 %548
        %551 = vset.pattern.permute.xlu0 3
        %552 = vperm.xlu0 %551, %v181
        %v553 = vpop.permute.xlu0 %552
        %555 = vset.pattern.permute.xlu0 3
        %556 = vperm.xlu0 %555, %v182
        %v557 = vpop.permute.xlu0 %556
        %559 = vset.pattern.permute.xlu0 3
        %560 = vperm.xlu0 %559, %v183
        %v561 = vpop.permute.xlu0 %560
        %563 = vset.pattern.permute.xlu0 3
        %564 = vperm.xlu0 %563, %v184
        %v565 = vpop.permute.xlu0 %564
        %567 = vset.pattern.permute.xlu0 3
        %568 = vperm.xlu0 %567, %v185
        %v569 = vpop.permute.xlu0 %568
        %v571 = vlaneseq
        %v572 = vshrl.u32 %v571, 7
        %v573 = vsub.s32 3, %v572
        %v574 = vrot.slane %v186, %v573
        %v575 = vmul.f32 %v509, %v574
        %v576 = vmul.f32 %v513, %v574
        %v577 = vmul.f32 %v517, %v574
        %v578 = vmul.f32 %v521, %v574
        %v579 = vmul.f32 %v525, %v574
        %v580 = vmul.f32 %v529, %v574
        %v581 = vmul.f32 %v533, %v574
        %v582 = vmul.f32 %v537, %v574
        %v583 = vmul.f32 %v541, %v574
        %v584 = vmul.f32 %v545, %v574
        %v585 = vmul.f32 %v549, %v574
        %v586 = vmul.f32 %v553, %v574
        %v587 = vmul.f32 %v557, %v574
        %v588 = vmul.f32 %v561, %v574
        %v589 = vmul.f32 %v565, %v574
        %v590 = vmul.f32 %v569, %v574
        %v591 = vadd.f32 %v491, %v575
        %v592 = vadd.f32 %v492, %v576
        %v593 = vadd.f32 %v493, %v577
        %v594 = vadd.f32 %v494, %v578
        %v595 = vadd.f32 %v495, %v579
        %v596 = vadd.f32 %v496, %v580
        %v597 = vadd.f32 %v497, %v581
        %v598 = vadd.f32 %v498, %v582
        %v599 = vadd.f32 %v499, %v583
        %v600 = vadd.f32 %v500, %v584
        %v601 = vadd.f32 %v501, %v585
        %v602 = vadd.f32 %v502, %v586
        %v603 = vadd.f32 %v503, %v587
        %v604 = vadd.f32 %v504, %v588
        %v605 = vadd.f32 %v505, %v589
        %v606 = vadd.f32 %v506, %v590
        %v607 = vmax.f32 %v591, 0.0
        %v608 = vmax.f32 %v592, 0.0
        %v609 = vmax.f32 %v593, 0.0
        %v610 = vmax.f32 %v594, 0.0
        %v611 = vmax.f32 %v595, 0.0
        %v612 = vmax.f32 %v596, 0.0
        %v613 = vmax.f32 %v597, 0.0
        %v614 = vmax.f32 %v598, 0.0
        %v615 = vmax.f32 %v599, 0.0
        %v616 = vmax.f32 %v600, 0.0
        %v617 = vmax.f32 %v601, 0.0
        %v618 = vmax.f32 %v602, 0.0
        %v619 = vmax.f32 %v603, 0.0
        %v620 = vmax.f32 %v604, 0.0
        %v621 = vmax.f32 %v605, 0.0
        %v622 = vmax.f32 %v606, 0.0
        %v623 = vld [vmem:[%s1] sm:$0xff]
        %v624 = vld [vmem:[%s1 + $0x8] sm:$0xff]
        %v625 = vld [vmem:[%s1 + $0x10] sm:$0xff]
        %v626 = vld [vmem:[%s1 + $0x18] sm:$0xff]
        %v627 = vld [vmem:[%s1 + $0x20] sm:$0xff]
        %v628 = vld [vmem:[%s1 + $0x28] sm:$0xff]
        %v629 = vld [vmem:[%s1 + $0x30] sm:$0xff]
        %v630 = vld [vmem:[%s1 + $0x38] sm:$0xff]
        %v631 = vlaneseq
        %v632 = vshrl.u32 %v631, 7
        %v633 = vsub.s32 5, %v632
        %v634 = vrot.slane %v186, %v633
        %vm635 = vcmask 523264
        %v637 = vsel %vm635, %v607, 0
        %v640 = vsel %vm635, %v608, 0
        %v643 = vsel %vm635, %v609, 0
        %v646 = vsel %vm635, %v610, 0
        %v649 = vsel %vm635, %v611, 0
        %v652 = vsel %vm635, %v612, 0
        %v655 = vsel %vm635, %v613, 0
        %v658 = vsel %vm635, %v614, 0
        %v661 = vsel %vm635, %v615, 0
        %v664 = vsel %vm635, %v616, 0
        %v667 = vsel %vm635, %v617, 0
        %v670 = vsel %vm635, %v618, 0
        %v673 = vsel %vm635, %v619, 0
        %v676 = vsel %vm635, %v620, 0
        %v679 = vsel %vm635, %v621, 0
        %v682 = vsel %vm635, %v622, 0
        %684 = vmatprep.subr.mxu0 0.0
        %685 = vmatpush1.msra.mxu0 %v623
        %686 = vmatprep.subr.mxu0 0.0
        %687 = vmatpush1.msra.mxu0 %v624
        %688 = vmatprep.subr.mxu0 0.0
        %689 = vmatpush1.msra.mxu0 %v625
        %690 = vmatprep.subr.mxu0 0.0
        %691 = vmatpush1.msra.mxu0 %v626
        %692 = vmatprep.subr.mxu0 0.0
        %693 = vmatpush1.msra.mxu0 %v627
        %694 = vmatprep.subr.mxu0 0.0
        %695 = vmatpush1.msra.mxu0 %v628
        %696 = vmatprep.subr.mxu0 0.0
        %697 = vmatpush1.msra.mxu0 %v629
        %698 = vmatprep.subr.mxu0 0.0
        %699 = vmatpush1.msra.mxu0 %v630
        %700 = vmatprep.subr.mxu0 0.0
        %701 = vmatpush1.msra.mxu0 0.0
        %702 = vmatprep.subr.mxu0 0.0
        %703 = vmatpush1.msra.mxu0 0.0
        %704 = vmatprep.subr.mxu0 0.0
        %705 = vmatpush1.msra.mxu0 0.0
        %706 = vmatprep.subr.mxu0 0.0
        %707 = vmatpush1.msra.mxu0 0.0
        %708 = vmatprep.subr.mxu0 0.0
        %709 = vmatpush1.msra.mxu0 0.0
        %710 = vmatprep.subr.mxu0 0.0
        %711 = vmatpush1.msra.mxu0 0.0
        %712 = vmatprep.subr.mxu0 0.0
        %713 = vmatpush1.msra.mxu0 0.0
        %714 = vmatprep.subr.mxu0 0.0
        %715 = vmatpush1.msra.mxu0 0.0
        %716 = vmatprep.subr.mxu0 0.0
        %717 = vmatpush1.msra.mxu0 0.0
        %718 = vmatprep.subr.mxu0 0.0
        %719 = vmatpush1.msra.mxu0 0.0
        %720 = vmatprep.subr.mxu0 0.0
        %721 = vmatpush1.msra.mxu0 0.0
        %722 = vmatprep.subr.mxu0 0.0
        %723 = vmatpush1.msra.mxu0 0.0
        %724 = vmatprep.subr.mxu0 0.0
        %725 = vmatpush1.msra.mxu0 0.0
        %726 = vmatprep.subr.mxu0 0.0
        %727 = vmatpush1.msra.mxu0 0.0
        %728 = vmatprep.subr.mxu0 0.0
        %729 = vmatpush1.msra.mxu0 0.0
        %730 = vmatprep.subr.mxu0 0.0
        %731 = vmatpush1.msra.mxu0 0.0
        %732 = vmatprep.subr.mxu0 0.0
        %733 = vmatpush1.msra.mxu0 0.0
        %734 = vmatprep.subr.mxu0 0.0
        %735 = vmatpush1.msra.mxu0 0.0
        %736 = vmatprep.subr.mxu0 0.0
        %737 = vmatpush1.msra.mxu0 0.0
        %738 = vmatprep.subr.mxu0 0.0
        %739 = vmatpush1.msra.mxu0 0.0
        %740 = vmatprep.subr.mxu0 0.0
        %741 = vmatpush1.msra.mxu0 0.0
        %742 = vmatprep.subr.mxu0 0.0
        %743 = vmatpush1.msra.mxu0 0.0
        %744 = vmatprep.subr.mxu0 0.0
        %745 = vmatpush1.msra.mxu0 0.0
        %746 = vmatprep.subr.mxu0 0.0
        %747 = vmatpush1.msra.mxu0 0.0
        %748 = vmatprep.mubr.f32.mxu0 0.0
        %749 = vmatmul.mubr.f32.gmra.mrb[0].mxu0 %v637
        %v750 = vpop.f32.mrb[0].mxu0
        %v751 = vadd.f32 %v634, %v750
        %v752 = vpop.f32.mrb[0].mxu0
        %753 = vmatprep.mubr.f32.mxu0 0.0
        %754 = vmatmul.mubr.f32.gmra.mrb[0].mxu0 %v640
        %v755 = vpop.f32.mrb[0].mxu0
        %v756 = vadd.f32 %v634, %v755
        %v757 = vpop.f32.mrb[0].mxu0
        %758 = vmatprep.mubr.f32.mxu0 0.0
        %759 = vmatmul.mubr.f32.gmra.mrb[0].mxu0 %v643
        %v760 = vpop.f32.mrb[0].mxu0
        %v761 = vadd.f32 %v634, %v760
        %v762 = vpop.f32.mrb[0].mxu0
        %763 = vmatprep.mubr.f32.mxu0 0.0
        %764 = vmatmul.mubr.f32.gmra.mrb[0].mxu0 %v646
        %v765 = vpop.f32.mrb[0].mxu0
        %v766 = vadd.f32 %v634, %v765
        %v767 = vpop.f32.mrb[0].mxu0
        %768 = vmatprep.mubr.f32.mxu0 0.0
        %769 = vmatmul.mubr.f32.gmra.mrb[0].mxu0 %v649
        %v770 = vpop.f32.mrb[0].mxu0
        %v771 = vadd.f32 %v634, %v770
        %v772 = vpop.f32.mrb[0].mxu0
        %773 = vmatprep.mubr.f32.mxu0 0.0
        %774 = vmatmul.mubr.f32.gmra.mrb[0].mxu0 %v652
        %v775 = vpop.f32.mrb[0].mxu0
        %v776 = vadd.f32 %v634, %v775
        %v777 = vpop.f32.mrb[0].mxu0
        %778 = vmatprep.mubr.f32.mxu0 0.0
        %779 = vmatmul.mubr.f32.gmra.mrb[0].mxu0 %v655
        %v780 = vpop.f32.mrb[0].mxu0
        %v781 = vadd.f32 %v634, %v780
        %v782 = vpop.f32.mrb[0].mxu0
        %783 = vmatprep.mubr.f32.mxu0 0.0
        %784 = vmatmul.mubr.f32.gmra.mrb[0].mxu0 %v658
        %v785 = vpop.f32.mrb[0].mxu0
        %v786 = vadd.f32 %v634, %v785
        %v787 = vpop.f32.mrb[0].mxu0
        %788 = vmatprep.mubr.f32.mxu0 0.0
        %789 = vmatmul.mubr.f32.gmra.mrb[0].mxu0 %v661
        %v790 = vpop.f32.mrb[0].mxu0
        %v791 = vadd.f32 %v634, %v790
        %v792 = vpop.f32.mrb[0].mxu0
        %793 = vmatprep.mubr.f32.mxu0 0.0
        %794 = vmatmul.mubr.f32.gmra.mrb[0].mxu0 %v664
        %v795 = vpop.f32.mrb[0].mxu0
        %v796 = vadd.f32 %v634, %v795
        %v797 = vpop.f32.mrb[0].mxu0
        %798 = vmatprep.mubr.f32.mxu0 0.0
        %799 = vmatmul.mubr.f32.gmra.mrb[0].mxu0 %v667
        %v800 = vpop.f32.mrb[0].mxu0
        %v801 = vadd.f32 %v634, %v800
        %v802 = vpop.f32.mrb[0].mxu0
        %803 = vmatprep.mubr.f32.mxu0 0.0
        %804 = vmatmul.mubr.f32.gmra.mrb[0].mxu0 %v670
        %v805 = vpop.f32.mrb[0].mxu0
        %v806 = vadd.f32 %v634, %v805
        %v807 = vpop.f32.mrb[0].mxu0
        %808 = vmatprep.mubr.f32.mxu0 0.0
        %809 = vmatmul.mubr.f32.gmra.mrb[0].mxu0 %v673
        %v810 = vpop.f32.mrb[0].mxu0
        %v811 = vadd.f32 %v634, %v810
        %v812 = vpop.f32.mrb[0].mxu0
        %813 = vmatprep.mubr.f32.mxu0 0.0
        %814 = vmatmul.mubr.f32.gmra.mrb[0].mxu0 %v676
        %v815 = vpop.f32.mrb[0].mxu0
        %v816 = vadd.f32 %v634, %v815
        %v817 = vpop.f32.mrb[0].mxu0
        %818 = vmatprep.mubr.f32.mxu0 0.0
        %819 = vmatmul.mubr.f32.gmra.mrb[0].mxu0 %v679
        %v820 = vpop.f32.mrb[0].mxu0
        %v821 = vadd.f32 %v634, %v820
        %v822 = vpop.f32.mrb[0].mxu0
        %823 = vmatprep.mubr.f32.mxu0 0.0
        %824 = vmatmul.mubr.f32.gmra.mrb[0].mxu0 %v682
        %v825 = vpop.f32.mrb[0].mxu0
        %v826 = vadd.f32 %v634, %v825
        %v827 = vpop.f32.mrb[0].mxu0
        %828 = vdwg.mxu0
        %v829 = vmax.f32 %v751, 0.0
        %v830 = vmax.f32 %v756, 0.0
        %v831 = vmax.f32 %v761, 0.0
        %v832 = vmax.f32 %v766, 0.0
        %v833 = vmax.f32 %v771, 0.0
        %v834 = vmax.f32 %v776, 0.0
        %v835 = vmax.f32 %v781, 0.0
        %v836 = vmax.f32 %v786, 0.0
        %v837 = vmax.f32 %v791, 0.0
        %v838 = vmax.f32 %v796, 0.0
        %v839 = vmax.f32 %v801, 0.0
        %v840 = vmax.f32 %v806, 0.0
        %v841 = vmax.f32 %v811, 0.0
        %v842 = vmax.f32 %v816, 0.0
        %v843 = vmax.f32 %v821, 0.0
        %v844 = vmax.f32 %v826, 0.0
        %846 = vset.pattern.permute.xlu0 0
        %847 = vperm.xlu0 %846, %v186
        %v848 = vpop.permute.xlu0 %847
        %v849 = vrot.slane %v186, 6
        %v850 = vrot.slane %v848, 7
        %v852 = vsel %vm635, %v849, 0
        %v855 = vsel %vm635, %v829, 0
        %v858 = vsel %vm635, %v830, 0
        %v861 = vsel %vm635, %v831, 0
        %v864 = vsel %vm635, %v832, 0
        %v867 = vsel %vm635, %v833, 0
        %v870 = vsel %vm635, %v834, 0
        %v873 = vsel %vm635, %v835, 0
        %v876 = vsel %vm635, %v836, 0
        %v879 = vsel %vm635, %v837, 0
        %v882 = vsel %vm635, %v838, 0
        %v885 = vsel %vm635, %v839, 0
        %v888 = vsel %vm635, %v840, 0
        %v891 = vsel %vm635, %v841, 0
        %v894 = vsel %vm635, %v842, 0
        %v897 = vsel %vm635, %v843, 0
        %v900 = vsel %vm635, %v844, 0
        %902 = vmatprep.subr.mxu0 0.0
        %903 = vmatpush1.xpose.msra.mxu0 %v855
        %904 = vmatprep.subr.mxu0 0.0
        %905 = vmatpush1.xpose.msra.mxu0 %v858
        %906 = vmatprep.subr.mxu0 0.0
        %907 = vmatpush1.xpose.msra.mxu0 %v861
        %908 = vmatprep.subr.mxu0 0.0
        %909 = vmatpush1.xpose.msra.mxu0 %v864
        %910 = vmatprep.subr.mxu0 0.0
        %911 = vmatpush1.xpose.msra.mxu0 %v867
        %912 = vmatprep.subr.mxu0 0.0
        %913 = vmatpush1.xpose.msra.mxu0 %v870
        %914 = vmatprep.subr.mxu0 0.0
        %915 = vmatpush1.xpose.msra.mxu0 %v873
        %916 = vmatprep.subr.mxu0 0.0
        %917 = vmatpush1.xpose.msra.mxu0 %v876
        %918 = vmatprep.subr.mxu0 0.0
        %919 = vmatpush1.xpose.msra.mxu0 %v879
        %920 = vmatprep.subr.mxu0 0.0
        %921 = vmatpush1.xpose.msra.mxu0 %v882
        %922 = vmatprep.subr.mxu0 0.0
        %923 = vmatpush1.xpose.msra.mxu0 %v885
        %924 = vmatprep.subr.mxu0 0.0
        %925 = vmatpush1.xpose.msra.mxu0 %v888
        %926 = vmatprep.subr.mxu0 0.0
        %927 = vmatpush1.xpose.msra.mxu0 %v891
        %928 = vmatprep.subr.mxu0 0.0
        %929 = vmatpush1.xpose.msra.mxu0 %v894
        %930 = vmatprep.subr.mxu0 0.0
        %931 = vmatpush1.xpose.msra.mxu0 %v897
        %932 = vmatprep.subr.mxu0 0.0
        %933 = vmatpush1.xpose.msra.mxu0 %v900
        %934 = vmatprep.subr.mxu0 0.0
        %935 = vmatpush1.xpose.msra.mxu0 0.0
        %936 = vmatprep.subr.mxu0 0.0
        %937 = vmatpush1.xpose.msra.mxu0 0.0
        %938 = vmatprep.subr.mxu0 0.0
        %939 = vmatpush1.xpose.msra.mxu0 0.0
        %940 = vmatprep.subr.mxu0 0.0
        %941 = vmatpush1.xpose.msra.mxu0 0.0
        %942 = vmatprep.subr.mxu0 0.0
        %943 = vmatpush1.xpose.msra.mxu0 0.0
        %944 = vmatprep.subr.mxu0 0.0
        %945 = vmatpush1.xpose.msra.mxu0 0.0
        %946 = vmatprep.subr.mxu0 0.0
        %947 = vmatpush1.xpose.msra.mxu0 0.0
        %948 = vmatprep.subr.mxu0 0.0
        %949 = vmatpush1.xpose.msra.mxu0 0.0
        %950 = vmatprep.subr.mxu0 0.0
        %951 = vmatpush1.xpose.msra.mxu0 0.0
        %952 = vmatprep.subr.mxu0 0.0
        %953 = vmatpush1.xpose.msra.mxu0 0.0
        %954 = vmatprep.subr.mxu0 0.0
        %955 = vmatpush1.xpose.msra.mxu0 0.0
        %956 = vmatprep.subr.mxu0 0.0
        %957 = vmatpush1.xpose.msra.mxu0 0.0
        %958 = vmatprep.subr.mxu0 0.0
        %959 = vmatpush1.xpose.msra.mxu0 0.0
        %960 = vmatprep.subr.mxu0 0.0
        %961 = vmatpush1.xpose.msra.mxu0 0.0
        %962 = vmatprep.subr.mxu0 0.0
        %963 = vmatpush1.xpose.msra.mxu0 0.0
        %964 = vmatprep.subr.mxu0 0.0
        %965 = vmatpush1.xpose.msra.mxu0 0.0
        %966 = vmatprep.mubr.f32.mxu0 0.0
        %967 = vmatmul.mubr.f32.gmra.mrb[0].mxu0 %v852
        %v968 = vpop.f32.mrb[0].mxu0
        %v969 = vadd.f32 %v850, %v968
        %v970 = vpop.f32.mrb[0].mxu0
        %971 = vdwg.mxu0
        %972 = vst [vmem:[%s163] sm:$0x1] %v969
        %s973 = sand.u32 %s93, 1
        %s974 = scalar_lea.sflag [#allocation3], %s973
        %s975 = sand.u32 %s93, 1
        %s976 = scalar_lea.vmem [#allocation2], %s975
        // Predicated region
        $region33: #{tpu_custom_call.1} parent=31 // pred_check
          %p977 = pneg %p103
        $region34: #{tpu_custom_call.1} parent=31 // pred_check_branch
          %979 = sbr.rel (%p977) target = $region36
        $region35: #{tpu_custom_call.1} parent=31 // pred_region
          %s981 = ssub.s32 16, 16
          %982 = vsyncadd %s974, %s981
          %s983 = smul.addr %s17, 16
          %s984 = scalar_lea.hbm %s3, %s983
          %s986 = sshll.u32 %s976, 4
          %s987 = int_to_ptr.vmem [resolvable:$true] %s986
          %989 = dma.vmem_to_hbm [thread:$0]  %s987, 16, %s984, %s974
        $region36: #{tpu_custom_call.1} parent=31 // pred_fallthru
          _
      $region32: #{tpu_custom_call.1} parent=5 // pred_fallthru
        _
      %p990 = scmp.le.s32.totalorder 2, %s12
      // Predicated region
      $region37: #{tpu_custom_call.1} parent=5 // pred_check
        %p991 = pneg %p990
      $region38: #{tpu_custom_call.1} parent=5 // pred_check_branch
        %993 = sbr.rel (%p991) target = $region40
      $region39: #{tpu_custom_call.1} parent=5 // pred_region
        %s994 = ssub.s32 %s12, 2
        // Predicated region
        $region41: #{tpu_custom_call.1} parent=39 // pred_check
          %p995 = pneg %p109
        $region42: #{tpu_custom_call.1} parent=39 // pred_check_branch
          %997 = sbr.rel (%p995) target = $region44
        $region43: #{tpu_custom_call.1} parent=39 // pred_region
          %s998 = sand.u32 %s94, 1
          %s999 = scalar_lea.sflag [#allocation3], %s998
          %s1000 = sand.u32 %s94, 1
          %s1001 = scalar_lea.vmem [#allocation2], %s1000
          %1002 = dma.done %s999, 16
        $region44: #{tpu_custom_call.1} parent=39 // pred_fallthru
          _
      $region40: #{tpu_custom_call.1} parent=5 // pred_fallthru
        _
    $region6: #{tpu_custom_call.1} parent=1 // loop_footer
      %s16 = sadd.s32 1, %s12
    $region7: #{tpu_custom_call.1} parent=1 // loop_footer_branch
      %11 = sbr.rel target = $region3
    $region8: #{tpu_custom_call.1} parent=1 // loop_exit
      _
    %1003 = vsyncpa [#allocation3], 1
    %s1004 = scalar_lea.sflag [#allocation3], 1
    %1005 = vsyncpa %s1004, 1

</llo_original>
